<compile_context>
chip_gen: v6e
topology: v6e:2x2x1
jax: 0.10.0
libtpu: 0.0.40
codegen_flags: <defaults>
</compile_context>

<pallas_src>
import functools

import numpy as np
import jax
import jax.numpy as jnp
from jax.experimental import pallas as pl
from jax.experimental.pallas import tpu as pltpu


PARAM_DTYPE = jnp.bfloat16   # bf16 weight storage, fp32 accumulation
ACT_DTYPE = jnp.bfloat16     # bf16 activations between kernels

FULL_K_MAX = 3072            # contractions up to this size use a single K step


def _vmem_limit_bytes():
    """Per-generation scoped-VMEM limit with headroom for Mosaic scratch."""
    phys = 64 * 1024 * 1024
    try:
        info = pltpu.get_tpu_info()
        phys = int(getattr(info, "vmem_capacity_bytes", phys))
    except Exception:
        pass
    # v7x (64 MiB phys) -> 48 MiB; v5e/v6e (128 MiB phys) -> 112 MiB
    return int(max(32 * 1024 * 1024,
                   min(phys - 16 * 1024 * 1024, 112 * 1024 * 1024)))


_VMEM_LIMIT = _vmem_limit_bytes()


def _cparams(dims):
    return pltpu.CompilerParams(dimension_semantics=dims,
                                vmem_limit_bytes=_VMEM_LIMIT)


# ------------------------------ small helpers -------------------------------

def _pick_tile(dim, target, align):
    """Choose a block size for `dim`.

    Returns (tile, padded_dim).  Full extent when dim <= target (full-extent
    blocks are exempt from the (8,128) divisibility rule).  Otherwise prefer
    the largest divisor of `dim` that is a multiple of `align` and <= target,
    so padded_dim == dim and no padded copies are materialized.  Only fall
    back to padding when no aligned divisor exists.
    """
    if dim <= target:
        return dim, dim
    t = (target // align) * align
    while t >= align:
        if dim % t == 0:
            return t, dim
        t -= align
    tile = max(align, (target // align) * align)
    return tile, int(pl.cdiv(dim, tile)) * tile


def _pad2(x, rows, cols):
    r, c = x.shape
    if r == rows and c == cols:
        return x
    return jnp.pad(x, ((0, rows - r), (0, cols - c)))


def _erf(x):
    # Abramowitz & Stegun 7.1.26 polynomial (|err| < 1.5e-7): only exp (EUP)
    # and VPU ops, so it fuses into matmul epilogues where the EUP slot is
    # otherwise idle.  Output matches torch.nn.GELU() to ~bf16 precision.
    a1, a2, a3, a4, a5 = (0.254829592, -0.284496736, 1.421413741,
                          -1.453152027, 1.061405429)
    p = 0.3275911
    sgn = jnp.where(x >= 0.0, 1.0, -1.0)
    ax = jnp.abs(x)
    t = 1.0 / (1.0 + p * ax)
    poly = ((((a5 * t + a4) * t + a3) * t + a2) * t + a1) * t
    return sgn * (1.0 - poly * jnp.exp(-ax * ax))


def _gelu(x):
    # exact (erf) GELU, matching torch.nn.GELU() up to the erf-poly error
    return 0.5 * x * (1.0 + _erf(x * 0.7071067811865476))


# ---------------------- tiled matmul (+ optional GELU) ----------------------

def _matmul_kernel(x_ref, w_ref, b_ref, o_ref, *, activation):
    # full-K: single reduction step, epilogue runs unconditionally
    y = jnp.dot(x_ref[...], w_ref[...], preferred_element_type=jnp.float32)
    y = y + b_ref[...].astype(jnp.float32)
    if activation == "gelu":
        y = _gelu(y)
    o_ref[...] = y.astype(o_ref.dtype)


def _matmul_acc_kernel(x_ref, w_ref, b_ref, o_ref, acc_ref, *, activation):
    # K-tiled fallback (not used at D<=3072 contractions)
    k = pl.program_id(2)

    @pl.when(k == 0)
    def _():
        acc_ref[...] = jnp.zeros_like(acc_ref)

    acc_ref[...] += jnp.dot(x_ref[...], w_ref[...],
                            preferred_element_type=jnp.float32)

    @pl.when(k == pl.num_programs(2) - 1)
    def _():
        y = acc_ref[...] + b_ref[...].astype(jnp.float32)
        if activation == "gelu":
            y = _gelu(y)
        o_ref[...] = y.astype(o_ref.dtype)


def linear(x, w, b, *, activation=None, out_dtype=None,
           tm=512, tn=1536, tk=1024):
    """(M,K) @ (K,N) + b with optional fused exact-GELU epilogue."""
    M, K = x.shape
    N = w.shape[1]
    out_dtype = out_dtype or x.dtype

    tm, Mp = _pick_tile(M, tm, 16)       # 16-row align: bf16 packs 2 rows/sublane
    tn, Np = _pick_tile(N, tn, 128)

    xp = _pad2(x, Mp, K)
    wp = _pad2(w, K, Np)
    bp = _pad2(b.reshape(1, N).astype(jnp.float32), 1, Np)

    cost = pl.CostEstimate(
        flops=2 * Mp * Np * K,
        transcendentals=Mp * Np if activation == "gelu" else 0,
        bytes_accessed=(xp.size * xp.dtype.itemsize
                        + wp.size * wp.dtype.itemsize
                        + Mp * Np * np.dtype(out_dtype).itemsize))

    if K <= FULL_K_MAX:
        out = pl.pallas_call(
            functools.partial(_matmul_kernel, activation=activation),
            out_shape=jax.ShapeDtypeStruct((Mp, Np), out_dtype),
            grid=(Mp // tm, Np // tn),
            in_specs=[
                pl.BlockSpec((tm, K), lambda i, j: (i, 0)),   # x resident per row tile
                pl.BlockSpec((K, tn), lambda i, j: (0, j)),   # w streamed over N
                pl.BlockSpec((1, tn), lambda i, j: (0, j)),
            ],
            out_specs=pl.BlockSpec((tm, tn), lambda i, j: (i, j)),
            compiler_params=_cparams(("parallel", "parallel")),
            cost_estimate=cost,
        )(xp, wp, bp)
    else:
        tk, Kp = _pick_tile(K, tk, 128)
        xp = _pad2(xp, Mp, Kp)
        wp = _pad2(wp, Kp, Np)
        out = pl.pallas_call(
            functools.partial(_matmul_acc_kernel, activation=activation),
            out_shape=jax.ShapeDtypeStruct((Mp, Np), out_dtype),
            grid=(Mp // tm, Np // tn, Kp // tk),
            in_specs=[
                pl.BlockSpec((tm, tk), lambda i, j, k: (i, k)),
                pl.BlockSpec((tk, tn), lambda i, j, k: (k, j)),
                pl.BlockSpec((1, tn), lambda i, j, k: (0, j)),
            ],
            out_specs=pl.BlockSpec((tm, tn), lambda i, j, k: (i, j)),
            scratch_shapes=[pltpu.VMEM((tm, tn), jnp.float32)],
            compiler_params=_cparams(("parallel", "parallel", "arbitrary")),
            cost_estimate=cost,
        )(xp, wp, bp)

    if (Mp, Np) != (M, N):
        out = out[:M, :N]
    return out


# ----------- tiled matmul with fused [GELU] + [residual] + LayerNorm --------

def _matmul_ln_kernel(*refs, eps, activation, has_resid):
    # full-K: no accumulator, epilogue runs unconditionally
    if has_resid:
        x_ref, w_ref, b_ref, r_ref, g_ref, bb_ref, o_ref = refs
    else:
        x_ref, w_ref, b_ref, g_ref, bb_ref, o_ref = refs
        r_ref = None
    y = jnp.dot(x_ref[...], w_ref[...], preferred_element_type=jnp.float32)
    y = y + b_ref[...].astype(jnp.float32)
    if activation == "gelu":
        y = _gelu(y)
    if r_ref is not None:
        y = y + r_ref[...].astype(jnp.float32)
    mean = jnp.mean(y, axis=-1, keepdims=True)
    cen = y - mean
    var = jnp.mean(cen * cen, axis=-1, keepdims=True)
    yn = cen * jax.lax.rsqrt(var + eps)
    o_ref[...] = (yn * g_ref[...].astype(jnp.float32)
                  + bb_ref[...].astype(jnp.float32)).astype(o_ref.dtype)


def _matmul_ln_acc_kernel(*refs, eps, activation, has_resid):
    # K-tiled fallback
    if has_resid:
        x_ref, w_ref, b_ref, r_ref, g_ref, bb_ref, o_ref, acc_ref = refs
    else:
        x_ref, w_ref, b_ref, g_ref, bb_ref, o_ref, acc_ref = refs
        r_ref = None
    k = pl.program_id(1)

    @pl.when(k == 0)
    def _():
        acc_ref[...] = jnp.zeros_like(acc_ref)

    acc_ref[...] += jnp.dot(x_ref[...], w_ref[...],
                            preferred_element_type=jnp.float32)

    @pl.when(k == pl.num_programs(1) - 1)
    def _():
        y = acc_ref[...] + b_ref[...].astype(jnp.float32)
        if activation == "gelu":
            y = _gelu(y)
        if r_ref is not None:
            y = y + r_ref[...].astype(jnp.float32)
        mean = jnp.mean(y, axis=-1, keepdims=True)
        cen = y - mean
        var = jnp.mean(cen * cen, axis=-1, keepdims=True)
        yn = cen * jax.lax.rsqrt(var + eps)
        o_ref[...] = (yn * g_ref[...].astype(jnp.float32)
                      + bb_ref[...].astype(jnp.float32)).astype(o_ref.dtype)


def linear_ln(x, w, b, gamma, beta, eps, *, resid=None, activation=None,
              out_dtype=None, tm=512, tk=1024):
    """LayerNorm( [resid +] act(x @ w + b) ) with the whole epilogue fused.
    N stays untiled so the LN reduction is block-local; K is untiled for
    K <= FULL_K_MAX (all contractions in this model)."""
    M, K = x.shape
    N = w.shape[1]
    out_dtype = out_dtype or x.dtype

    tm, Mp = _pick_tile(M, tm, 16)
    xp = _pad2(x, Mp, K)
    rp = None if resid is None else _pad2(resid, Mp, N)
    bp = b.reshape(1, N).astype(jnp.float32)
    gp = gamma.reshape(1, N).astype(jnp.float32)
    betap = beta.reshape(1, N).astype(jnp.float32)

    if K <= FULL_K_MAX:
        in_specs = [
            pl.BlockSpec((tm, K), lambda i: (i, 0)),
            pl.BlockSpec((K, N), lambda i: (0, 0)),
            pl.BlockSpec((1, N), lambda i: (0, 0)),
        ]
        args = [xp, w, bp]
        if rp is not None:
            in_specs.append(pl.BlockSpec((tm, N), lambda i: (i, 0)))
            args.append(rp)
        in_specs += [pl.BlockSpec((1, N), lambda i: (0, 0)),
                     pl.BlockSpec((1, N), lambda i: (0, 0))]
        args += [gp, betap]
        out = pl.pallas_call(
            functools.partial(_matmul_ln_kernel, eps=eps,
                              activation=activation,
                              has_resid=rp is not None),
            out_shape=jax.ShapeDtypeStruct((Mp, N), out_dtype),
            grid=(Mp // tm,),
            in_specs=in_specs,
            out_specs=pl.BlockSpec((tm, N), lambda i: (i, 0)),
            compiler_params=_cparams(("parallel",)),
        )(*args)
    else:
        tk, Kp = _pick_tile(K, tk, 128)
        xp = _pad2(xp, Mp, Kp)
        wp = _pad2(w, Kp, N)
        in_specs = [
            pl.BlockSpec((tm, tk), lambda i, k: (i, k)),
            pl.BlockSpec((tk, N), lambda i, k: (k, 0)),
            pl.BlockSpec((1, N), lambda i, k: (0, 0)),
        ]
        args = [xp, wp, bp]
        if rp is not None:
            in_specs.append(pl.BlockSpec((tm, N), lambda i, k: (i, 0)))
            args.append(rp)
        in_specs += [pl.BlockSpec((1, N), lambda i, k: (0, 0)),
                     pl.BlockSpec((1, N), lambda i, k: (0, 0))]
        args += [gp, betap]
        out = pl.pallas_call(
            functools.partial(_matmul_ln_acc_kernel, eps=eps,
                              activation=activation,
                              has_resid=rp is not None),
            out_shape=jax.ShapeDtypeStruct((Mp, N), out_dtype),
            grid=(Mp // tm, Kp // tk),
            in_specs=in_specs,
            out_specs=pl.BlockSpec((tm, N), lambda i, k: (i, 0)),
            scratch_shapes=[pltpu.VMEM((tm, N), jnp.float32)],
            compiler_params=_cparams(("parallel", "arbitrary")),
        )(*args)

    if Mp != M:
        out = out[:M]
    return out


# ------------------------ row-tiled LayerNorm (embeddings) ------------------

def _layernorm_kernel(x_ref, g_ref, b_ref, o_ref, *, eps):
    x = x_ref[...].astype(jnp.float32)
    mean = jnp.mean(x, axis=-1, keepdims=True)
    cen = x - mean
    var = jnp.mean(cen * cen, axis=-1, keepdims=True)
    y = cen * jax.lax.rsqrt(var + eps)
    o_ref[...] = (y * g_ref[...].astype(jnp.float32)
                  + b_ref[...].astype(jnp.float32)).astype(o_ref.dtype)


def layernorm(x, gamma, beta, eps, *, tm=512):
    M, D = x.shape
    tm, Mp = _pick_tile(M, tm, 16)
    xp = _pad2(x, Mp, D)
    out = pl.pallas_call(
        functools.partial(_layernorm_kernel, eps=eps),
        out_shape=jax.ShapeDtypeStruct((Mp, D), x.dtype),
        grid=(Mp // tm,),
        in_specs=[pl.BlockSpec((tm, D), lambda i: (i, 0)),
                  pl.BlockSpec((1, D), lambda i: (0, 0)),
                  pl.BlockSpec((1, D), lambda i: (0, 0))],
        out_specs=pl.BlockSpec((tm, D), lambda i: (i, 0)),
        compiler_params=_cparams(("parallel",)),
    )(xp, gamma.reshape(1, D).astype(jnp.float32),
      beta.reshape(1, D).astype(jnp.float32))
    if Mp != M:
        out = out[:M]
    return out


# ----------------------------- attention kernel -----------------------------

def _attention_kernel(qkv_ref, o_ref, o_acc, *, num_heads, head_dim, scale):
    # One batch element per grid step.  The fused (S, 3D) Q|K|V slab is split
    # into heads in-kernel (static lane slices); each head's result is written
    # into the (S, D) fp32 VMEM scratch at its static column offset and the
    # final HBM store is a single lane-dense (S, D) cast + store (no concat,
    # no H live partials).
    # TODO(synk): for S >= ~1K, switch to a flash-style KV-tiled loop with a
    # (B, H) / (B, S//tq) grid so both v7x TensorCores are fed and the SxS
    # score block never materializes.
    D = num_heads * head_dim
    qkv = qkv_ref[0]                       # (S, 3D), bf16
    for h in range(num_heads):
        qh = qkv[:, h * head_dim:(h + 1) * head_dim]
        kh = qkv[:, D + h * head_dim:D + (h + 1) * head_dim]
        vh = qkv[:, 2 * D + h * head_dim:2 * D + (h + 1) * head_dim]
        s = jax.lax.dot_general(qh, kh, (((1,), (1,)), ((), ())),
                                preferred_element_type=jnp.float32) * scale
        m = jnp.max(s, axis=-1, keepdims=True)
        p = jnp.exp(s - m)
        l = jnp.sum(p, axis=-1, keepdims=True)
        oh = jnp.dot(p.astype(vh.dtype), vh,
                     preferred_element_type=jnp.float32)
        # exact fp32 divide (numerical parity with F.scaled_dot_product_attention)
        o_acc[:, h * head_dim:(h + 1) * head_dim] = oh / l
    o_ref[0] = o_acc[...].astype(o_ref.dtype)


def attention(qkv, num_heads, head_dim):
    """qkv: (B, S, 3D) fused projections -> (B, S, D) attention output;
    matches F.scaled_dot_product_attention(attn_mask=None, dropout_p=0)."""
    B, S, threeD = qkv.shape
    D = num_heads * head_dim
    scale = 1.0 / float(head_dim) ** 0.5
    return pl.pallas_call(
        functools.partial(_attention_kernel, num_heads=num_heads,
                          head_dim=head_dim, scale=scale),
        out_shape=jax.ShapeDtypeStruct((B, S, D), qkv.dtype),
        grid=(B,),
        in_specs=[pl.BlockSpec((1, S, threeD), lambda b: (b, 0, 0))],
        out_specs=pl.BlockSpec((1, S, D), lambda b: (b, 0, 0)),
        scratch_shapes=[pltpu.VMEM((S, D), jnp.float32)],
        compiler_params=_cparams(("parallel",)),
    )(qkv)


# ----------------------------- parameter init -------------------------------

def init_params(key, cfg):
    D = cfg["embedding_dimension"]
    V = cfg["vocab_size"]
    Vp = int(pl.cdiv(V, 128)) * 128   # pad vocab ONCE at init (lane multiple)
    C = cfg["context_length"]
    Hid = D * cfg["mlp_ratio"]
    L = cfg["num_transformer_blocks"]

    keys = iter(jax.random.split(key, 16 + 8 * L))

    def nrm(shape):
        return (0.02 * jax.random.normal(next(keys), shape, jnp.float32)
                ).astype(PARAM_DTYPE)

    def zeros(shape):
        return jnp.zeros(shape, jnp.float32)

    def ones(shape):
        return jnp.ones(shape, jnp.float32)

    params = {
        "word_emb": nrm((V, D)).at[cfg["pad_token"]].set(0.0),
        "pos_emb": nrm((C, D)),
        "emb_ln_g": ones((D,)), "emb_ln_b": zeros((D,)),
        "layers": [],
        "mlm_dense_w": nrm((D, D)), "mlm_dense_b": zeros((D,)),
        "mlm_ln_g": ones((D,)), "mlm_ln_b": zeros((D,)),
        # decoder is an independent nn.Linear in the reference module (untied);
        # vocab dim pre-padded so the forward pass never copies the weight.
        "dec_w": nrm((D, Vp)), "dec_b": zeros((Vp,)),
    }
    for _ in range(L):
        params["layers"].append({
            # q|k|v projections fused into one (D, 3D) weight / (3D,) bias
            "w_qkv": nrm((D, 3 * D)), "b_qkv": zeros((3 * D,)),
            "wo": nrm((D, D)), "bo": zeros((D,)),
            "ln1_g": ones((D,)), "ln1_b": zeros((D,)),
            "w1": nrm((D, Hid)), "b1": zeros((Hid,)),
            "w2": nrm((Hid, D)), "b2": zeros((D,)),
            "ln2_g": ones((D,)), "ln2_b": zeros((D,)),
        })
    return params


# ------------------------------- forward pass -------------------------------

def roberta_for_masked_lm(params, input_ids, cfg):
    B, S = input_ids.shape
    D = cfg["embedding_dimension"]
    H = cfg["num_attention_heads"]
    Dh = D // H
    V = cfg["vocab_size"]
    eps = cfg["layer_norm_eps"]

    # --- RobertaEmbeddings (token gather in plain JAX, LN in Pallas).
    # The reference uses arange(0, S) position ids (no RoBERTa pad offset)
    # and no token-type embeddings; dropout is identity in eval mode.
    word = jnp.take(params["word_emb"], input_ids, axis=0)      # (B, S, D)
    pos = params["pos_emb"][:S]                                  # (S, D)
    x = (word + pos[None]).reshape(B * S, D).astype(ACT_DTYPE)
    x = layernorm(x, params["emb_ln_g"], params["emb_ln_b"], eps)

    # --- RobertaEncoder ---
    for lp in params["layers"]:
        # fused Q|K|V projection: one full-K matmul reads x from HBM once
        qkv = linear(x, lp["w_qkv"], lp["b_qkv"])                # (B*S, 3D)
        attn = attention(qkv.reshape(B, S, 3 * D), H, Dh)        # (B, S, D)
        # out-proj + residual-add + LayerNorm fused into one kernel epilogue
        x = linear_ln(attn.reshape(B * S, D), lp["wo"], lp["bo"],
                      lp["ln1_g"], lp["ln1_b"], eps, resid=x)
        # FFN: w1 with fused exact-GELU; w2 with fused residual + LayerNorm
        h = linear(x, lp["w1"], lp["b1"], activation="gelu")
        x = linear_ln(h, lp["w2"], lp["b2"],
                      lp["ln2_g"], lp["ln2_b"], eps, resid=x)

    hidden_states = x.reshape(B, S, D)

    # --- RobertaMLMHead: LN(GELU(dense(x))) fused, then vocab decoder ---
    y = linear_ln(x, params["mlm_dense_w"], params["mlm_dense_b"],
                  params["mlm_ln_g"], params["mlm_ln_b"], eps,
                  activation="gelu")
    # decoder: K=768-class contraction stays untiled, big row tile so the
    # weight is streamed as few times as possible; fp32 logits.
    preds = linear(y, params["dec_w"], params["dec_b"],
                   out_dtype=jnp.float32, tm=1024)
    preds = preds[:, :V].reshape(B, S, V)   # drop init-time vocab padding

    # labels=None -> return (hidden_states, preds)
    return hidden_states, preds


# ----------------------------------- main ------------------------------------

if __name__ == "__main__":
    cfg = dict(
        vocab_size=64,
        embedding_dimension=32,
        context_length=16,
        pad_token=1,
        num_attention_heads=2,
        mlp_ratio=4,
        num_transformer_blocks=2,
        layer_norm_eps=1e-5,
        hidden_dropout_p=0.1,      # unused in eval mode
        attention_dropout_p=0.1,   # unused in eval mode
    )

    key = jax.random.PRNGKey(0)
    pkey, ikey = jax.random.split(key)
    params = init_params(pkey, cfg)

    B, S = 2, 8
    input_ids = jax.random.randint(ikey, (B, S), 0, cfg["vocab_size"],
                                   dtype=jnp.int32)

    hidden_states, preds = roberta_for_masked_lm(params, input_ids, cfg)
    jax.block_until_ready((hidden_states, preds))

    assert hidden_states.shape == (B, S, cfg["embedding_dimension"])
    assert preds.shape == (B, S, cfg["vocab_size"])
    assert bool(jnp.all(jnp.isfinite(hidden_states.astype(jnp.float32))))
    assert bool(jnp.all(jnp.isfinite(preds)))
    print("KERNEL_OK")
</pallas_src>

<mosaic_0001>
module attributes {stable_mosaic.version = 11 : i64} {
  func.func @_layernorm_kernel(%arg0: i32, %arg1: memref<16x32xbf16, #tpu.memory_space<vmem>>, %arg2: memref<1x32xf32, #tpu.memory_space<vmem>>, %arg3: memref<1x32xf32, #tpu.memory_space<vmem>>, %arg4: memref<16x32xbf16, #tpu.memory_space<vmem>>) attributes {dimension_semantics = [#tpu.dimension_semantics<parallel>], iteration_bounds = array<i64: 1>, scalar_prefetch = 0 : i64, scratch_operands = 0 : i64, tpu.core_type = #tpu.core_type<tc>, window_params = [{transform_indices = @transform_0, window_bounds = array<i64: 16, 32>}, {pipeline_mode = #tpu.pipeline_mode<synchronous>, transform_indices = @transform_1, window_bounds = array<i64: 1, 32>}, {pipeline_mode = #tpu.pipeline_mode<synchronous>, transform_indices = @transform_2, window_bounds = array<i64: 1, 32>}, {transform_indices = @transform_3, window_bounds = array<i64: 16, 32>}]} {
    %c0 = arith.constant 0 : index
    %c0_0 = arith.constant 0 : index
    %0 = vector.load %arg1[%c0, %c0_0] : memref<16x32xbf16, #tpu.memory_space<vmem>>, vector<16x32xbf16>
    %1 = arith.extf %0 : vector<16x32xbf16> to vector<16x32xf32>
    %cst = arith.constant dense<0.000000e+00> : vector<16xf32>
    %2 = vector.multi_reduction <add>, %1, %cst [1] : vector<16x32xf32> to vector<16xf32>
    %3 = vector.shape_cast %2 : vector<16xf32> to vector<16x1xf32>
    %cst_1 = arith.constant 3.200000e+01 : f32
    %4 = vector.broadcast %cst_1 : f32 to vector<16x1xf32>
    %5 = arith.divf %3, %4 : vector<16x1xf32>
    %6 = vector.broadcast %5 : vector<16x1xf32> to vector<16x32xf32>
    %7 = arith.subf %1, %6 : vector<16x32xf32>
    %8 = arith.mulf %7, %7 : vector<16x32xf32>
    %cst_2 = arith.constant dense<0.000000e+00> : vector<16xf32>
    %9 = vector.multi_reduction <add>, %8, %cst_2 [1] : vector<16x32xf32> to vector<16xf32>
    %10 = vector.shape_cast %9 : vector<16xf32> to vector<16x1xf32>
    %cst_3 = arith.constant 3.200000e+01 : f32
    %11 = vector.broadcast %cst_3 : f32 to vector<16x1xf32>
    %12 = arith.divf %10, %11 : vector<16x1xf32>
    %cst_4 = arith.constant 9.99999974E-6 : f32
    %13 = vector.broadcast %cst_4 : f32 to vector<16x1xf32>
    %14 = arith.addf %12, %13 : vector<16x1xf32>
    %15 = math.rsqrt %14 : vector<16x1xf32>
    %16 = vector.broadcast %15 : vector<16x1xf32> to vector<16x32xf32>
    %17 = arith.mulf %7, %16 : vector<16x32xf32>
    %c0_5 = arith.constant 0 : index
    %c0_6 = arith.constant 0 : index
    %18 = vector.load %arg2[%c0_5, %c0_6] : memref<1x32xf32, #tpu.memory_space<vmem>>, vector<1x32xf32>
    %19 = vector.broadcast %18 : vector<1x32xf32> to vector<16x32xf32>
    %20 = arith.mulf %17, %19 : vector<16x32xf32>
    %c0_7 = arith.constant 0 : index
    %c0_8 = arith.constant 0 : index
    %21 = vector.load %arg3[%c0_7, %c0_8] : memref<1x32xf32, #tpu.memory_space<vmem>>, vector<1x32xf32>
    %22 = vector.broadcast %21 : vector<1x32xf32> to vector<16x32xf32>
    %23 = arith.addf %20, %22 : vector<16x32xf32>
    %24 = arith.truncf %23 : vector<16x32xf32> to vector<16x32xbf16>
    %c0_9 = arith.constant 0 : index
    %c0_10 = arith.constant 0 : index
    %25 = vector.load %arg4[%c0_9, %c0_10] : memref<16x32xbf16, #tpu.memory_space<vmem>>, vector<16x32xbf16>
    tpu.vector_store %arg4[%c0_9, %c0_10], %24 {strides = array<i32>} : memref<16x32xbf16, #tpu.memory_space<vmem>>, vector<16x32xbf16>,
    return
  }
  func.func @transform_0(%arg0: i32) -> (i32, i32) {
    %c0_i32 = arith.constant 0 : i32
    %c0_i32_0 = arith.constant 0 : i32
    return %arg0, %c0_i32 : i32, i32
  }
  func.func @transform_1(%arg0: i32) -> (i32, i32) {
    %c0_i32 = arith.constant 0 : i32
    %c0_i32_0 = arith.constant 0 : i32
    %c0_i32_1 = arith.constant 0 : i32
    return %c0_i32, %c0_i32_0 : i32, i32
  }
  func.func @transform_2(%arg0: i32) -> (i32, i32) {
    %c0_i32 = arith.constant 0 : i32
    %c0_i32_0 = arith.constant 0 : i32
    %c0_i32_1 = arith.constant 0 : i32
    return %c0_i32, %c0_i32_0 : i32, i32
  }
  func.func @transform_3(%arg0: i32) -> (i32, i32) {
    %c0_i32 = arith.constant 0 : i32
    %c0_i32_0 = arith.constant 0 : i32
    return %arg0, %c0_i32 : i32, i32
  }
}

</mosaic_0001>

<llo_original>
// kernel: tpu_custom_call.1
$region0: #{tpu_custom_call.1}
  #allocation0 [shape = 'u32[]', space=smem, size = 0x4, offset = 0x4, fixed_abs, tag = 'smem constant byte address 0x4 - core index']
  #allocation1 [shape = 'u32[144,128]{1,0:T(1,128)}', space=vmem, size = 0x12000, scoped, tag = 'internal scratch']
  %s0 = inlined_call_operand.hbm [shape: bf16[16,32], index: 0, kind: input, shape index: {}]
  %s1 = inlined_call_operand.vmem [shape: f32[1,32], index: 1, kind: input, shape index: {}]
  %s2 = inlined_call_operand.vmem [shape: f32[1,32], index: 2, kind: input, shape index: {}]
  %s3 = inlined_call_operand.hbm [shape: bf16[16,32], index: 3, kind: output, shape index: {}]
  %s4 = sld [smem:[#allocation0]]
  $region26: #{tpu_custom_call.1} parent=0
    _
  %s6 = ssub.s32 1, %s4
  %s7 = scalar_select 0, %s6, %s4
  $region1: #{tpu_custom_call.1} parent=0
    #allocation2 [shape = 'u8[4096]{0}', space=vmem, size = 0x1000, scoped, tag = 'input window, operand 0, single buffered']
    #allocation3 [shape = 's32[1]{0}', space=sflag, size = 0x4, scoped, tag = 'scoped memory for tpu_custom_call.1']
    #allocation4 [shape = 's32[1]{0}', space=sflag, size = 0x4, scoped, tag = 'scoped memory for tpu_custom_call.1']
    #allocation5 [shape = 'u8[4096]{0}', space=vmem, size = 0x1000, scoped, tag = 'output window, operand 0, single buffered']
    %8 = vsyncpa [#allocation3], 0
    %9 = vsyncpa [#allocation4], 0
    // Predicated region
    $region2: #{tpu_custom_call.1} parent=1 // pred_check
      _
    $region3: #{tpu_custom_call.1} parent=1 // pred_check_branch
      %11 = sbr.rel (0) target = $region5
    $region4: #{tpu_custom_call.1} parent=1 // pred_region
      %s13 = ssub.s32 128, 128
      %14 = vsyncadd [#allocation3], %s13
      %s15 = sshll.u32 [#allocation2], 4
      %s16 = int_to_ptr.vmem [resolvable:$true] %s15
      %21 = dma.hbm_to_vmem [thread:$0]  %s0, 128, %s16, [#allocation3], 64, 64, 4
    $region5: #{tpu_custom_call.1} parent=1 // pred_fallthru
      _
    // Predicated region
    $region6: #{tpu_custom_call.1} parent=1 // pred_check
      _
    $region7: #{tpu_custom_call.1} parent=1 // pred_check_branch
      %23 = sbr.rel (0) target = $region9
    $region8: #{tpu_custom_call.1} parent=1 // pred_region
      _
    $region9: #{tpu_custom_call.1} parent=1 // pred_fallthru
      _
    // Predicated region
    $region10: #{tpu_custom_call.1} parent=1 // pred_check
      _
    $region11: #{tpu_custom_call.1} parent=1 // pred_check_branch
      %25 = sbr.rel (0) target = $region13
    $region12: #{tpu_custom_call.1} parent=1 // pred_region
      _
    $region13: #{tpu_custom_call.1} parent=1 // pred_fallthru
      _
    // Predicated region
    $region14: #{tpu_custom_call.1} parent=1 // pred_check
      _
    $region15: #{tpu_custom_call.1} parent=1 // pred_check_branch
      %27 = sbr.rel (0) target = $region17
    $region16: #{tpu_custom_call.1} parent=1 // pred_region
      %28 = dma.done [#allocation3], 128
    $region17: #{tpu_custom_call.1} parent=1 // pred_fallthru
      _
    %v29 = vld [vmem:[#allocation2] sm:$0xf]
    %v30 = vld [vmem:[#allocation2 + $0x4] sm:$0xf]
    %v31 = vunpack.c.l.bf16 %v29
    %v32 = vunpack.c.l.bf16 %v30
    %vm33 = vcmask 261120
    %v34 = vsel %vm33, %v31, 0.0
    %35 = vadd.xlane.f32.xlu0 %v34
    %v36 = vpop.xlane.xlu0 %35
    %v37 = vsel %vm33, %v32, 0.0
    %38 = vadd.xlane.f32.xlu0 %v37
    %v39 = vpop.xlane.xlu0 %38
    %v40 = vrcp.pop 32.0
    %v41 = vmul.f32 %v36, %v40
    %v42 = vmul.f32 %v39, %v40
    %v43 = vsub.f32 %v31, %v41
    %v44 = vsub.f32 %v32, %v42
    %v45 = vmul.f32 %v43, %v43
    %v46 = vmul.f32 %v44, %v44
    %v47 = vsel %vm33, %v45, 0.0
    %48 = vadd.xlane.f32.xlu0 %v47
    %v49 = vpop.xlane.xlu0 %48
    %v50 = vsel %vm33, %v46, 0.0
    %51 = vadd.xlane.f32.xlu0 %v50
    %v52 = vpop.xlane.xlu0 %51
    %v53 = vmul.f32 %v49, %v40
    %v54 = vmul.f32 %v52, %v40
    %v55 = vadd.f32 %v53, 1e-05
    %v56 = vadd.f32 %v54, 1e-05
    %v57 = vrsqrt.pop %v55
    %v58 = vrsqrt.pop %v56
    %v59 = vmul.f32 %v43, %v57
    %v60 = vmul.f32 %v44, %v58
    %v61 = vld [vmem:[%s1] sm:$0x1]
    %v63 = vlaneseq
    %v64 = vshrl.u32 %v63, 7
    %v65 = vsub.s32 0, %v64
    %v66 = vrot.slane %v61, %v65
    %v68 = vmul.f32 %v59, %v66
    %v69 = vmul.f32 %v60, %v66
    %v70 = vld [vmem:[%s2] sm:$0x1]
    %v72 = vlaneseq
    %v73 = vshrl.u32 %v72, 7
    %v74 = vsub.s32 0, %v73
    %v75 = vrot.slane %v70, %v74
    %v77 = vadd.f32 %v68, %v75
    %v78 = vadd.f32 %v69, %v75
    %v79 = vpack.c.bf16 %v78, %v77
    %v81 = vunpack.c.l.b16 %v79
    %v82 = vunpack.c.h.b16 %v79
    %v83 = vpack.c.b16 %v81, %v81
    %v84 = vpack.c.b16 %v82, %v82
    %vm87 = vcmask 257024
    %88 = vst.msk [vmem:[#allocation5] sm:$0xf] %vm87, %v83
    %89 = vst.msk [vmem:[#allocation5 + $0x4] sm:$0xf] %vm87, %v84
    // Predicated region
    $region18: #{tpu_custom_call.1} parent=1 // pred_check
      _
    $region19: #{tpu_custom_call.1} parent=1 // pred_check_branch
      %91 = sbr.rel (0) target = $region21
    $region20: #{tpu_custom_call.1} parent=1 // pred_region
      %s93 = ssub.s32 128, 128
      %94 = vsyncadd [#allocation4], %s93
      %s95 = sshll.u32 [#allocation5], 4
      %s96 = int_to_ptr.vmem [resolvable:$true] %s95
      %101 = dma.vmem_to_hbm [thread:$0]  %s96, 128, %s3, [#allocation4], 64, 64, 4
    $region21: #{tpu_custom_call.1} parent=1 // pred_fallthru
      _
    // Predicated region
    $region22: #{tpu_custom_call.1} parent=1 // pred_check
      _
    $region23: #{tpu_custom_call.1} parent=1 // pred_check_branch
      %103 = sbr.rel (0) target = $region25
    $region24: #{tpu_custom_call.1} parent=1 // pred_region
      %104 = dma.done [#allocation4], 128
    $region25: #{tpu_custom_call.1} parent=1 // pred_fallthru
      _
    %105 = vsyncpa [#allocation3], 1
    %106 = vsyncpa [#allocation4], 1

</llo_original>
